<compile_context>
chip_gen: v5e
topology: v5e:2x2
jax: 0.10.0
libtpu: 0.0.40
codegen_flags: <defaults>
</compile_context>

<pallas_src>
from functools import partial

import jax
import jax.numpy as jnp
from jax import lax
from jax.experimental import pallas as pl
from jax.experimental.pallas import tpu as pltpu

# ----------------------------- model dimensions ------------------------------
B = 2          # batch
T = 10         # subword (transformer) sequence length
S = 8          # word-level max sequence length
E = 32         # synthetic embedding dim
H = 32         # transformer output dim (LinearEncoder input_dim)
L = 8          # label_size (includes START = L-2, END = L-1)
START, END = L - 2, L - 1
VOCAB = 50


# ==================== fused Pallas kernel: embed -> CRF NLL ===================
def _fused_crf_kernel(sub_ids_ref, tok_idx_ref, tags_ref, lens_ref, pos_ref,
                      embed_ref, w_proj_ref, b_proj_ref, w_enc_ref, b_enc_ref,
                      trans_ref, t_to_end_ref, out_ref, *, Bb, Ss):
    f32 = jnp.float32
    BT = sub_ids_ref.shape[0]          # B*T
    SB = Ss * Bb                       # S*B (time-major rows: row = t*B + b)
    V = embed_ref.shape[0]
    Ll = w_enc_ref.shape[1]
    start = Ll - 2

    # --- 1. synthetic embedding lookup as a one-hot MXU matmul (table in VMEM)
    sub_ids = sub_ids_ref[...]                                              # (B*T,1) int32
    oh_sub = (sub_ids == lax.broadcasted_iota(jnp.int32, (BT, V), 1)).astype(f32)
    x_emb = jnp.dot(oh_sub, embed_ref[...], preferred_element_type=f32)     # (B*T,E)

    # --- 2. "transformer" projection (MXU) + tanh (EUP)
    subword_rep = jnp.tanh(
        jnp.dot(x_emb, w_proj_ref[...], preferred_element_type=f32)
        + b_proj_ref[...])                                                  # (B*T,H)

    # --- 3. word-level gather (orig_to_tok_index, pre-offset by b*T) as one-hot matmul
    tok_idx = tok_idx_ref[...]                                              # (S*B,1) int32
    oh_tok = (tok_idx == lax.broadcasted_iota(jnp.int32, (SB, BT), 1)).astype(f32)
    word_rep = jnp.dot(oh_tok, subword_rep, preferred_element_type=f32)     # (S*B,H)

    # --- 4. LinearEncoder emissions (time-major flat rows)
    emis = jnp.dot(word_rep, w_enc_ref[...], preferred_element_type=f32) \
        + b_enc_ref[...]                                                    # (S*B,L)

    trans = trans_ref[...]                                                  # (L,L)
    t_from_start = trans[start:start + 1, :]                                # (1,L) static slice: trans[START,:]
    t_to_end = t_to_end_ref[...]                                            # (1,L) = trans[:,END] (pre-sliced by wrapper)

    lens_b = lens_ref[0:Bb, :]                                              # (B,1): rows t=0 hold word_seq_lens

    # --- 5. partition (unlabeled) score: forward recursion, unrolled over static S
    alpha = t_from_start + emis[0:Bb, :]                                    # (B,L)
    for t in range(1, Ss):
        emis_t = emis[t * Bb:(t + 1) * Bb, :]                               # (B,L) contiguous slice
        m = alpha[:, :, None] + trans[None, :, :] + emis_t[:, None, :]      # (B,L,L)
        mx = jnp.max(m, axis=1, keepdims=True)
        new_alpha = mx[:, 0, :] + jnp.log(jnp.sum(jnp.exp(m - mx), axis=1))
        alpha = jnp.where(t < lens_b, new_alpha, alpha)                     # freeze past seq_len
    last = alpha + t_to_end                                                 # (B,L)
    mx = jnp.max(last, axis=1, keepdims=True)
    logz = mx + jnp.log(jnp.sum(jnp.exp(last - mx), axis=1, keepdims=True))
    unlabeled = jnp.sum(logz)

    # --- 6. gold-path (labeled) score
    tags = tags_ref[...]                                                    # (S*B,1) int32
    oh = (tags == lax.broadcasted_iota(jnp.int32, (SB, Ll), 1)).astype(f32) # (S*B,L)
    valid = (pos_ref[...] < lens_ref[...]).astype(f32)                      # (S*B,1): t <  len_b
    lastpos = (pos_ref[...] == lens_ref[...] - 1).astype(f32)               # (S*B,1): t == len_b-1

    gold_emis = jnp.sum(emis * oh * valid)
    begin = jnp.sum(oh[0:Bb, :] * t_from_start)
    r = jnp.dot(oh, trans, preferred_element_type=f32)                      # r[row,j] = trans[tag_row, j]
    middle = jnp.sum(r[:SB - Bb, :] * oh[Bb:, :] * valid[Bb:, :])
    end_sc = jnp.sum(oh * lastpos * t_to_end)
    labeled = gold_emis + begin + middle + end_sc

    out_ref[0, 0] = unlabeled - labeled


# ------------------------------- full forward --------------------------------
@jax.jit
def transformers_crf_forward(params, subword_input_ids, word_seq_lens,
                             orig_to_tok_index, attention_mask, labels):
    del attention_mask  # TODO(synk): consumed only by the real pretrained HF transformer
    Bb, Tt = subword_input_ids.shape
    _, Ss = orig_to_tok_index.shape
    Ll = params['transition'].shape[0]
    Hh = params['w_proj'].shape[1]

    # ---- wrapper-side layout plumbing (tiny int ops; keeps the kernel free of
    #      reshapes / gathers).  Flat rows are time-major: row = t*B + b.
    sub_ids = subword_input_ids.astype(jnp.int32).reshape(Bb * Tt, 1)
    batch_off = jnp.arange(Bb, dtype=jnp.int32)[:, None] * Tt                    # (B,1)
    tok_idx = (orig_to_tok_index.astype(jnp.int32) + batch_off).T.reshape(Ss * Bb, 1)
    tags_flat = labels.astype(jnp.int32).T.reshape(Ss * Bb, 1)
    lens_flat = jnp.broadcast_to(word_seq_lens.astype(jnp.int32)[None, :],
                                 (Ss, Bb)).reshape(Ss * Bb, 1)
    pos_flat = jnp.broadcast_to(jnp.arange(Ss, dtype=jnp.int32)[:, None],
                                (Ss, Bb)).reshape(Ss * Bb, 1)
    t_to_end = params['transition'][:, Ll - 1][None, :]                          # (1,L): trans[l, END]

    out = pl.pallas_call(
        partial(_fused_crf_kernel, Bb=Bb, Ss=Ss),
        out_shape=jax.ShapeDtypeStruct((1, 1), jnp.float32),
        in_specs=[pl.BlockSpec(memory_space=pltpu.MemorySpace.VMEM)] * 12,
        out_specs=pl.BlockSpec(memory_space=pltpu.MemorySpace.SMEM),
    )(sub_ids, tok_idx, tags_flat, lens_flat, pos_flat,
      params['embed'], params['w_proj'], params['b_proj'].reshape(1, Hh),
      params['w_enc'], params['b_enc'].reshape(1, Ll),
      params['transition'], t_to_end)
    return out[0, 0]


# ------------------------------ params & reference ----------------------------
def init_params(key):
    ks = jax.random.split(key, 4)
    embed = jax.random.normal(ks[0], (VOCAB, E), jnp.float32) * 0.1
    w_proj = jax.random.normal(ks[1], (E, H), jnp.float32) * 0.1
    b_proj = jnp.zeros((H,), jnp.float32)
    w_enc = jax.random.normal(ks[2], (H, L), jnp.float32) * 0.1
    b_enc = jnp.zeros((L,), jnp.float32)
    transition = jax.random.normal(ks[3], (L, L), jnp.float32)
    # LinearCRF init: no transition into START, none out of END
    transition = transition.at[:, START].set(-10000.0)
    transition = transition.at[END, :].set(-10000.0)
    return dict(embed=embed, w_proj=w_proj, b_proj=b_proj,
                w_enc=w_enc, b_enc=b_enc, transition=transition)


def reference_loss(params, subword_input_ids, word_seq_lens, orig_to_tok_index, labels):
    hp = jax.lax.Precision.HIGHEST
    emb = jnp.take(params['embed'], subword_input_ids, axis=0)
    h = jnp.tanh(jnp.matmul(emb, params['w_proj'], precision=hp) + params['b_proj'])
    word_rep = jnp.take_along_axis(h, orig_to_tok_index[:, :, None], axis=1)
    emis = jnp.matmul(word_rep, params['w_enc'], precision=hp) + params['b_enc']
    trans = params['transition']
    Bb, Ss, Ll = emis.shape
    start, end = Ll - 2, Ll - 1
    lens, tags = word_seq_lens, labels
    alpha = trans[start][None, :] + emis[:, 0, :]
    for t in range(1, Ss):
        m = alpha[:, :, None] + trans[None, :, :] + emis[:, t, None, :]
        new = jax.scipy.special.logsumexp(m, axis=1)
        alpha = jnp.where((t < lens)[:, None], new, alpha)
    last = alpha + trans[:, end][None, :]
    unlabeled = jnp.sum(jax.scipy.special.logsumexp(last, axis=1))
    pos = jnp.arange(Ss)[None, :]
    pos_mask = (pos < lens[:, None]).astype(jnp.float32)
    gold_emis = jnp.sum(jnp.take_along_axis(emis, tags[:, :, None], axis=2)[:, :, 0] * pos_mask)
    begin = jnp.sum(trans[start, tags[:, 0]])
    middle = jnp.sum(trans[tags[:, :-1], tags[:, 1:]] * pos_mask[:, 1:])
    last_tag = jnp.take_along_axis(tags, (lens - 1)[:, None], axis=1)[:, 0]
    endsc = jnp.sum(trans[last_tag, end])
    labeled = gold_emis + begin + middle + endsc
    return unlabeled - labeled


if __name__ == "__main__":
    key = jax.random.PRNGKey(0)
    pkey, dkey = jax.random.split(key)
    params = init_params(pkey)

    k1, k2, k3 = jax.random.split(dkey, 3)
    subword_input_ids = jax.random.randint(k1, (B, T), 0, VOCAB, dtype=jnp.int32)
    word_seq_lens = jnp.array([S, 5], dtype=jnp.int32)
    orig_to_tok_index = jax.random.randint(k2, (B, S), 0, T, dtype=jnp.int32)
    attention_mask = jnp.ones((B, T), dtype=jnp.int32)
    labels = jax.random.randint(k3, (B, S), 0, L - 2, dtype=jnp.int32)  # gold tags (no START/END)

    loss = transformers_crf_forward(params, subword_input_ids, word_seq_lens,
                                    orig_to_tok_index, attention_mask, labels)
    loss = jax.block_until_ready(loss)

    ref = reference_loss(params, subword_input_ids, word_seq_lens,
                         orig_to_tok_index, labels)
    assert jnp.allclose(loss, ref, rtol=1e-2, atol=5e-2), (float(loss), float(ref))
    print("KERNEL_OK")
</pallas_src>

<mosaic_0001>
module attributes {stable_mosaic.version = 11 : i64} {
  func.func @_fused_crf_kernel(%arg0: memref<20x1xi32, #tpu.memory_space<vmem>>, %arg1: memref<16x1xi32, #tpu.memory_space<vmem>>, %arg2: memref<16x1xi32, #tpu.memory_space<vmem>>, %arg3: memref<16x1xi32, #tpu.memory_space<vmem>>, %arg4: memref<16x1xi32, #tpu.memory_space<vmem>>, %arg5: memref<50x32xf32, #tpu.memory_space<vmem>>, %arg6: memref<32x32xf32, #tpu.memory_space<vmem>>, %arg7: memref<1x32xf32, #tpu.memory_space<vmem>>, %arg8: memref<32x8xf32, #tpu.memory_space<vmem>>, %arg9: memref<1x8xf32, #tpu.memory_space<vmem>>, %arg10: memref<8x8xf32, #tpu.memory_space<vmem>>, %arg11: memref<1x8xf32, #tpu.memory_space<vmem>>, %arg12: memref<1x1xf32, #tpu.memory_space<smem>>) attributes {dimension_semantics = [], scalar_prefetch = 0 : i64, scratch_operands = 0 : i64, tpu.core_type = #tpu.core_type<tc>} {
    %c0 = arith.constant 0 : index
    %c0_0 = arith.constant 0 : index
    %0 = vector.load %arg0[%c0, %c0_0] : memref<20x1xi32, #tpu.memory_space<vmem>>, vector<20x1xi32>
    %1 = tpu.iota {dimensions = array<i32: 1>} : vector<20x50xi32>
    %2 = vector.broadcast %0 : vector<20x1xi32> to vector<20x50xi32>
    %3 = arith.cmpi eq, %2, %1 : vector<20x50xi32>
    %4 = arith.extui %3 : vector<20x50xi1> to vector<20x50xi32>
    %5 = arith.sitofp %4 : vector<20x50xi32> to vector<20x50xf32>
    %c0_1 = arith.constant 0 : index
    %c0_2 = arith.constant 0 : index
    %6 = vector.load %arg5[%c0_1, %c0_2] : memref<50x32xf32, #tpu.memory_space<vmem>>, vector<50x32xf32>
    %cst = arith.constant dense<0.000000e+00> : vector<20x32xf32>
    %7 = tpu.matmul %5, %6, %cst {dimension_numbers = #tpu.dot_dimension_numbers<[1], [0], [0], [1], [0, 0, 1, 1], [], []>} : vector<20x50xf32>, vector<50x32xf32>, vector<20x32xf32> -> vector<20x32xf32>
    %c0_3 = arith.constant 0 : index
    %c0_4 = arith.constant 0 : index
    %8 = vector.load %arg6[%c0_3, %c0_4] : memref<32x32xf32, #tpu.memory_space<vmem>>, vector<32x32xf32>
    %cst_5 = arith.constant dense<0.000000e+00> : vector<20x32xf32>
    %9 = tpu.matmul %7, %8, %cst_5 {dimension_numbers = #tpu.dot_dimension_numbers<[1], [0], [0], [1], [0, 0, 1, 1], [], []>} : vector<20x32xf32>, vector<32x32xf32>, vector<20x32xf32> -> vector<20x32xf32>
    %c0_6 = arith.constant 0 : index
    %c0_7 = arith.constant 0 : index
    %10 = vector.load %arg7[%c0_6, %c0_7] : memref<1x32xf32, #tpu.memory_space<vmem>>, vector<1x32xf32>
    %11 = vector.broadcast %10 : vector<1x32xf32> to vector<20x32xf32>
    %12 = arith.addf %9, %11 : vector<20x32xf32>
    %13 = math.tanh %12 : vector<20x32xf32>
    %c0_8 = arith.constant 0 : index
    %c0_9 = arith.constant 0 : index
    %14 = vector.load %arg1[%c0_8, %c0_9] : memref<16x1xi32, #tpu.memory_space<vmem>>, vector<16x1xi32>
    %15 = tpu.iota {dimensions = array<i32: 1>} : vector<16x20xi32>
    %16 = vector.broadcast %14 : vector<16x1xi32> to vector<16x20xi32>
    %17 = arith.cmpi eq, %16, %15 : vector<16x20xi32>
    %18 = arith.extui %17 : vector<16x20xi1> to vector<16x20xi32>
    %19 = arith.sitofp %18 : vector<16x20xi32> to vector<16x20xf32>
    %cst_10 = arith.constant dense<0.000000e+00> : vector<16x32xf32>
    %20 = tpu.matmul %19, %13, %cst_10 {dimension_numbers = #tpu.dot_dimension_numbers<[1], [0], [0], [1], [0, 0, 1, 1], [], []>} : vector<16x20xf32>, vector<20x32xf32>, vector<16x32xf32> -> vector<16x32xf32>
    %c0_11 = arith.constant 0 : index
    %c0_12 = arith.constant 0 : index
    %21 = vector.load %arg8[%c0_11, %c0_12] : memref<32x8xf32, #tpu.memory_space<vmem>>, vector<32x8xf32>
    %cst_13 = arith.constant dense<0.000000e+00> : vector<16x8xf32>
    %22 = tpu.matmul %20, %21, %cst_13 {dimension_numbers = #tpu.dot_dimension_numbers<[1], [0], [0], [1], [0, 0, 1, 1], [], []>} : vector<16x32xf32>, vector<32x8xf32>, vector<16x8xf32> -> vector<16x8xf32>
    %c0_14 = arith.constant 0 : index
    %c0_15 = arith.constant 0 : index
    %23 = vector.load %arg9[%c0_14, %c0_15] : memref<1x8xf32, #tpu.memory_space<vmem>>, vector<1x8xf32>
    %24 = vector.broadcast %23 : vector<1x8xf32> to vector<16x8xf32>
    %25 = arith.addf %22, %24 : vector<16x8xf32>
    %c0_16 = arith.constant 0 : index
    %c0_17 = arith.constant 0 : index
    %26 = vector.load %arg10[%c0_16, %c0_17] : memref<8x8xf32, #tpu.memory_space<vmem>>, vector<8x8xf32>
    %27 = vector.extract_strided_slice %26 {offsets = [6, 0], sizes = [1, 8], strides = [1, 1]} : vector<8x8xf32> to vector<1x8xf32>
    %c0_18 = arith.constant 0 : index
    %c0_19 = arith.constant 0 : index
    %28 = vector.load %arg11[%c0_18, %c0_19] : memref<1x8xf32, #tpu.memory_space<vmem>>, vector<1x8xf32>
    %c0_20 = arith.constant 0 : index
    %c0_21 = arith.constant 0 : index
    %29 = vector.load %arg3[%c0_20, %c0_21] : memref<16x1xi32, #tpu.memory_space<vmem>>, vector<2x1xi32>
    %30 = vector.extract_strided_slice %25 {offsets = [0, 0], sizes = [2, 8], strides = [1, 1]} : vector<16x8xf32> to vector<2x8xf32>
    %31 = vector.broadcast %27 : vector<1x8xf32> to vector<2x8xf32>
    %32 = arith.addf %31, %30 : vector<2x8xf32>
    %33 = vector.extract_strided_slice %25 {offsets = [2, 0], sizes = [2, 8], strides = [1, 1]} : vector<16x8xf32> to vector<2x8xf32>
    %34 = vector.shape_cast %32 : vector<2x8xf32> to vector<2x8x1xf32>
    %35 = vector.shape_cast %26 : vector<8x8xf32> to vector<1x8x8xf32>
    %36 = vector.broadcast %34 : vector<2x8x1xf32> to vector<2x8x8xf32>
    %37 = vector.broadcast %35 : vector<1x8x8xf32> to vector<2x8x8xf32>
    %38 = arith.addf %36, %37 : vector<2x8x8xf32>
    %39 = vector.shape_cast %33 : vector<2x8xf32> to vector<2x1x8xf32>
    %40 = vector.broadcast %39 : vector<2x1x8xf32> to vector<2x8x8xf32>
    %41 = arith.addf %38, %40 : vector<2x8x8xf32>
    %cst_22 = arith.constant dense<0xFF800000> : vector<2x8xf32>
    %42 = vector.multi_reduction <maximumf>, %41, %cst_22 [1] : vector<2x8x8xf32> to vector<2x8xf32>
    %43 = vector.shape_cast %42 : vector<2x8xf32> to vector<2x1x8xf32>
    %44 = vector.shape_cast %43 : vector<2x1x8xf32> to vector<2x8xf32>
    %45 = vector.broadcast %43 : vector<2x1x8xf32> to vector<2x8x8xf32>
    %46 = arith.subf %41, %45 : vector<2x8x8xf32>
    %47 = math.exp %46 : vector<2x8x8xf32>
    %cst_23 = arith.constant dense<0.000000e+00> : vector<2x8xf32>
    %48 = vector.multi_reduction <add>, %47, %cst_23 [1] : vector<2x8x8xf32> to vector<2x8xf32>
    %49 = math.log %48 : vector<2x8xf32>
    %50 = arith.addf %44, %49 : vector<2x8xf32>
    %c1_i32 = arith.constant 1 : i32
    %51 = vector.broadcast %c1_i32 : i32 to vector<2x1xi32>
    %52 = arith.cmpi sgt, %29, %51 : vector<2x1xi32>
    %53 = vector.shape_cast %52 : vector<2x1xi1> to vector<2x1xi1>
    %54 = vector.broadcast %53 : vector<2x1xi1> to vector<2x8xi1>
    %55 = arith.select %54, %50, %32 : vector<2x8xi1>, vector<2x8xf32>
    %56 = vector.extract_strided_slice %25 {offsets = [4, 0], sizes = [2, 8], strides = [1, 1]} : vector<16x8xf32> to vector<2x8xf32>
    %57 = vector.shape_cast %55 : vector<2x8xf32> to vector<2x8x1xf32>
    %58 = vector.shape_cast %26 : vector<8x8xf32> to vector<1x8x8xf32>
    %59 = vector.broadcast %57 : vector<2x8x1xf32> to vector<2x8x8xf32>
    %60 = vector.broadcast %58 : vector<1x8x8xf32> to vector<2x8x8xf32>
    %61 = arith.addf %59, %60 : vector<2x8x8xf32>
    %62 = vector.shape_cast %56 : vector<2x8xf32> to vector<2x1x8xf32>
    %63 = vector.broadcast %62 : vector<2x1x8xf32> to vector<2x8x8xf32>
    %64 = arith.addf %61, %63 : vector<2x8x8xf32>
    %cst_24 = arith.constant dense<0xFF800000> : vector<2x8xf32>
    %65 = vector.multi_reduction <maximumf>, %64, %cst_24 [1] : vector<2x8x8xf32> to vector<2x8xf32>
    %66 = vector.shape_cast %65 : vector<2x8xf32> to vector<2x1x8xf32>
    %67 = vector.shape_cast %66 : vector<2x1x8xf32> to vector<2x8xf32>
    %68 = vector.broadcast %66 : vector<2x1x8xf32> to vector<2x8x8xf32>
    %69 = arith.subf %64, %68 : vector<2x8x8xf32>
    %70 = math.exp %69 : vector<2x8x8xf32>
    %cst_25 = arith.constant dense<0.000000e+00> : vector<2x8xf32>
    %71 = vector.multi_reduction <add>, %70, %cst_25 [1] : vector<2x8x8xf32> to vector<2x8xf32>
    %72 = math.log %71 : vector<2x8xf32>
    %73 = arith.addf %67, %72 : vector<2x8xf32>
    %c2_i32 = arith.constant 2 : i32
    %74 = vector.broadcast %c2_i32 : i32 to vector<2x1xi32>
    %75 = arith.cmpi sgt, %29, %74 : vector<2x1xi32>
    %76 = vector.shape_cast %75 : vector<2x1xi1> to vector<2x1xi1>
    %77 = vector.broadcast %76 : vector<2x1xi1> to vector<2x8xi1>
    %78 = arith.select %77, %73, %55 : vector<2x8xi1>, vector<2x8xf32>
    %79 = vector.extract_strided_slice %25 {offsets = [6, 0], sizes = [2, 8], strides = [1, 1]} : vector<16x8xf32> to vector<2x8xf32>
    %80 = vector.shape_cast %78 : vector<2x8xf32> to vector<2x8x1xf32>
    %81 = vector.shape_cast %26 : vector<8x8xf32> to vector<1x8x8xf32>
    %82 = vector.broadcast %80 : vector<2x8x1xf32> to vector<2x8x8xf32>
    %83 = vector.broadcast %81 : vector<1x8x8xf32> to vector<2x8x8xf32>
    %84 = arith.addf %82, %83 : vector<2x8x8xf32>
    %85 = vector.shape_cast %79 : vector<2x8xf32> to vector<2x1x8xf32>
    %86 = vector.broadcast %85 : vector<2x1x8xf32> to vector<2x8x8xf32>
    %87 = arith.addf %84, %86 : vector<2x8x8xf32>
    %cst_26 = arith.constant dense<0xFF800000> : vector<2x8xf32>
    %88 = vector.multi_reduction <maximumf>, %87, %cst_26 [1] : vector<2x8x8xf32> to vector<2x8xf32>
    %89 = vector.shape_cast %88 : vector<2x8xf32> to vector<2x1x8xf32>
    %90 = vector.shape_cast %89 : vector<2x1x8xf32> to vector<2x8xf32>
    %91 = vector.broadcast %89 : vector<2x1x8xf32> to vector<2x8x8xf32>
    %92 = arith.subf %87, %91 : vector<2x8x8xf32>
    %93 = math.exp %92 : vector<2x8x8xf32>
    %cst_27 = arith.constant dense<0.000000e+00> : vector<2x8xf32>
    %94 = vector.multi_reduction <add>, %93, %cst_27 [1] : vector<2x8x8xf32> to vector<2x8xf32>
    %95 = math.log %94 : vector<2x8xf32>
    %96 = arith.addf %90, %95 : vector<2x8xf32>
    %c3_i32 = arith.constant 3 : i32
    %97 = vector.broadcast %c3_i32 : i32 to vector<2x1xi32>
    %98 = arith.cmpi sgt, %29, %97 : vector<2x1xi32>
    %99 = vector.shape_cast %98 : vector<2x1xi1> to vector<2x1xi1>
    %100 = vector.broadcast %99 : vector<2x1xi1> to vector<2x8xi1>
    %101 = arith.select %100, %96, %78 : vector<2x8xi1>, vector<2x8xf32>
    %102 = vector.extract_strided_slice %25 {offsets = [8, 0], sizes = [2, 8], strides = [1, 1]} : vector<16x8xf32> to vector<2x8xf32>
    %103 = vector.shape_cast %101 : vector<2x8xf32> to vector<2x8x1xf32>
    %104 = vector.shape_cast %26 : vector<8x8xf32> to vector<1x8x8xf32>
    %105 = vector.broadcast %103 : vector<2x8x1xf32> to vector<2x8x8xf32>
    %106 = vector.broadcast %104 : vector<1x8x8xf32> to vector<2x8x8xf32>
    %107 = arith.addf %105, %106 : vector<2x8x8xf32>
    %108 = vector.shape_cast %102 : vector<2x8xf32> to vector<2x1x8xf32>
    %109 = vector.broadcast %108 : vector<2x1x8xf32> to vector<2x8x8xf32>
    %110 = arith.addf %107, %109 : vector<2x8x8xf32>
    %cst_28 = arith.constant dense<0xFF800000> : vector<2x8xf32>
    %111 = vector.multi_reduction <maximumf>, %110, %cst_28 [1] : vector<2x8x8xf32> to vector<2x8xf32>
    %112 = vector.shape_cast %111 : vector<2x8xf32> to vector<2x1x8xf32>
    %113 = vector.shape_cast %112 : vector<2x1x8xf32> to vector<2x8xf32>
    %114 = vector.broadcast %112 : vector<2x1x8xf32> to vector<2x8x8xf32>
    %115 = arith.subf %110, %114 : vector<2x8x8xf32>
    %116 = math.exp %115 : vector<2x8x8xf32>
    %cst_29 = arith.constant dense<0.000000e+00> : vector<2x8xf32>
    %117 = vector.multi_reduction <add>, %116, %cst_29 [1] : vector<2x8x8xf32> to vector<2x8xf32>
    %118 = math.log %117 : vector<2x8xf32>
    %119 = arith.addf %113, %118 : vector<2x8xf32>
    %c4_i32 = arith.constant 4 : i32
    %120 = vector.broadcast %c4_i32 : i32 to vector<2x1xi32>
    %121 = arith.cmpi sgt, %29, %120 : vector<2x1xi32>
    %122 = vector.shape_cast %121 : vector<2x1xi1> to vector<2x1xi1>
    %123 = vector.broadcast %122 : vector<2x1xi1> to vector<2x8xi1>
    %124 = arith.select %123, %119, %101 : vector<2x8xi1>, vector<2x8xf32>
    %125 = vector.extract_strided_slice %25 {offsets = [10, 0], sizes = [2, 8], strides = [1, 1]} : vector<16x8xf32> to vector<2x8xf32>
    %126 = vector.shape_cast %124 : vector<2x8xf32> to vector<2x8x1xf32>
    %127 = vector.shape_cast %26 : vector<8x8xf32> to vector<1x8x8xf32>
    %128 = vector.broadcast %126 : vector<2x8x1xf32> to vector<2x8x8xf32>
    %129 = vector.broadcast %127 : vector<1x8x8xf32> to vector<2x8x8xf32>
    %130 = arith.addf %128, %129 : vector<2x8x8xf32>
    %131 = vector.shape_cast %125 : vector<2x8xf32> to vector<2x1x8xf32>
    %132 = vector.broadcast %131 : vector<2x1x8xf32> to vector<2x8x8xf32>
    %133 = arith.addf %130, %132 : vector<2x8x8xf32>
    %cst_30 = arith.constant dense<0xFF800000> : vector<2x8xf32>
    %134 = vector.multi_reduction <maximumf>, %133, %cst_30 [1] : vector<2x8x8xf32> to vector<2x8xf32>
    %135 = vector.shape_cast %134 : vector<2x8xf32> to vector<2x1x8xf32>
    %136 = vector.shape_cast %135 : vector<2x1x8xf32> to vector<2x8xf32>
    %137 = vector.broadcast %135 : vector<2x1x8xf32> to vector<2x8x8xf32>
    %138 = arith.subf %133, %137 : vector<2x8x8xf32>
    %139 = math.exp %138 : vector<2x8x8xf32>
    %cst_31 = arith.constant dense<0.000000e+00> : vector<2x8xf32>
    %140 = vector.multi_reduction <add>, %139, %cst_31 [1] : vector<2x8x8xf32> to vector<2x8xf32>
    %141 = math.log %140 : vector<2x8xf32>
    %142 = arith.addf %136, %141 : vector<2x8xf32>
    %c5_i32 = arith.constant 5 : i32
    %143 = vector.broadcast %c5_i32 : i32 to vector<2x1xi32>
    %144 = arith.cmpi sgt, %29, %143 : vector<2x1xi32>
    %145 = vector.shape_cast %144 : vector<2x1xi1> to vector<2x1xi1>
    %146 = vector.broadcast %145 : vector<2x1xi1> to vector<2x8xi1>
    %147 = arith.select %146, %142, %124 : vector<2x8xi1>, vector<2x8xf32>
    %148 = vector.extract_strided_slice %25 {offsets = [12, 0], sizes = [2, 8], strides = [1, 1]} : vector<16x8xf32> to vector<2x8xf32>
    %149 = vector.shape_cast %147 : vector<2x8xf32> to vector<2x8x1xf32>
    %150 = vector.shape_cast %26 : vector<8x8xf32> to vector<1x8x8xf32>
    %151 = vector.broadcast %149 : vector<2x8x1xf32> to vector<2x8x8xf32>
    %152 = vector.broadcast %150 : vector<1x8x8xf32> to vector<2x8x8xf32>
    %153 = arith.addf %151, %152 : vector<2x8x8xf32>
    %154 = vector.shape_cast %148 : vector<2x8xf32> to vector<2x1x8xf32>
    %155 = vector.broadcast %154 : vector<2x1x8xf32> to vector<2x8x8xf32>
    %156 = arith.addf %153, %155 : vector<2x8x8xf32>
    %cst_32 = arith.constant dense<0xFF800000> : vector<2x8xf32>
    %157 = vector.multi_reduction <maximumf>, %156, %cst_32 [1] : vector<2x8x8xf32> to vector<2x8xf32>
    %158 = vector.shape_cast %157 : vector<2x8xf32> to vector<2x1x8xf32>
    %159 = vector.shape_cast %158 : vector<2x1x8xf32> to vector<2x8xf32>
    %160 = vector.broadcast %158 : vector<2x1x8xf32> to vector<2x8x8xf32>
    %161 = arith.subf %156, %160 : vector<2x8x8xf32>
    %162 = math.exp %161 : vector<2x8x8xf32>
    %cst_33 = arith.constant dense<0.000000e+00> : vector<2x8xf32>
    %163 = vector.multi_reduction <add>, %162, %cst_33 [1] : vector<2x8x8xf32> to vector<2x8xf32>
    %164 = math.log %163 : vector<2x8xf32>
    %165 = arith.addf %159, %164 : vector<2x8xf32>
    %c6_i32 = arith.constant 6 : i32
    %166 = vector.broadcast %c6_i32 : i32 to vector<2x1xi32>
    %167 = arith.cmpi sgt, %29, %166 : vector<2x1xi32>
    %168 = vector.shape_cast %167 : vector<2x1xi1> to vector<2x1xi1>
    %169 = vector.broadcast %168 : vector<2x1xi1> to vector<2x8xi1>
    %170 = arith.select %169, %165, %147 : vector<2x8xi1>, vector<2x8xf32>
    %171 = vector.extract_strided_slice %25 {offsets = [14, 0], sizes = [2, 8], strides = [1, 1]} : vector<16x8xf32> to vector<2x8xf32>
    %172 = vector.shape_cast %170 : vector<2x8xf32> to vector<2x8x1xf32>
    %173 = vector.shape_cast %26 : vector<8x8xf32> to vector<1x8x8xf32>
    %174 = vector.broadcast %172 : vector<2x8x1xf32> to vector<2x8x8xf32>
    %175 = vector.broadcast %173 : vector<1x8x8xf32> to vector<2x8x8xf32>
    %176 = arith.addf %174, %175 : vector<2x8x8xf32>
    %177 = vector.shape_cast %171 : vector<2x8xf32> to vector<2x1x8xf32>
    %178 = vector.broadcast %177 : vector<2x1x8xf32> to vector<2x8x8xf32>
    %179 = arith.addf %176, %178 : vector<2x8x8xf32>
    %cst_34 = arith.constant dense<0xFF800000> : vector<2x8xf32>
    %180 = vector.multi_reduction <maximumf>, %179, %cst_34 [1] : vector<2x8x8xf32> to vector<2x8xf32>
    %181 = vector.shape_cast %180 : vector<2x8xf32> to vector<2x1x8xf32>
    %182 = vector.shape_cast %181 : vector<2x1x8xf32> to vector<2x8xf32>
    %183 = vector.broadcast %181 : vector<2x1x8xf32> to vector<2x8x8xf32>
    %184 = arith.subf %179, %183 : vector<2x8x8xf32>
    %185 = math.exp %184 : vector<2x8x8xf32>
    %cst_35 = arith.constant dense<0.000000e+00> : vector<2x8xf32>
    %186 = vector.multi_reduction <add>, %185, %cst_35 [1] : vector<2x8x8xf32> to vector<2x8xf32>
    %187 = math.log %186 : vector<2x8xf32>
    %188 = arith.addf %182, %187 : vector<2x8xf32>
    %c7_i32 = arith.constant 7 : i32
    %189 = vector.broadcast %c7_i32 : i32 to vector<2x1xi32>
    %190 = arith.cmpi sgt, %29, %189 : vector<2x1xi32>
    %191 = vector.shape_cast %190 : vector<2x1xi1> to vector<2x1xi1>
    %192 = vector.broadcast %191 : vector<2x1xi1> to vector<2x8xi1>
    %193 = arith.select %192, %188, %170 : vector<2x8xi1>, vector<2x8xf32>
    %194 = vector.broadcast %28 : vector<1x8xf32> to vector<2x8xf32>
    %195 = arith.addf %193, %194 : vector<2x8xf32>
    %cst_36 = arith.constant dense<0xFF800000> : vector<2xf32>
    %196 = vector.multi_reduction <maximumf>, %195, %cst_36 [1] : vector<2x8xf32> to vector<2xf32>
    %197 = vector.shape_cast %196 : vector<2xf32> to vector<2x1xf32>
    %198 = vector.broadcast %197 : vector<2x1xf32> to vector<2x8xf32>
    %199 = arith.subf %195, %198 : vector<2x8xf32>
    %200 = math.exp %199 : vector<2x8xf32>
    %cst_37 = arith.constant dense<0.000000e+00> : vector<2xf32>
    %201 = vector.multi_reduction <add>, %200, %cst_37 [1] : vector<2x8xf32> to vector<2xf32>
    %202 = vector.shape_cast %201 : vector<2xf32> to vector<2x1xf32>
    %203 = math.log %202 : vector<2x1xf32>
    %204 = arith.addf %197, %203 : vector<2x1xf32>
    %205 = vector.shape_cast %204 : vector<2x1xf32> to vector<1x2x1xf32>
    %cst_38 = arith.constant dense<0.000000e+00> : vector<1xf32>
    %206 = vector.multi_reduction <add>, %205, %cst_38 [1, 2] : vector<1x2x1xf32> to vector<1xf32>
    %207 = vector.shape_cast %206 : vector<1xf32> to vector<1x1x1xf32>
    %208 = vector.extract %207[0, 0, 0] : f32 from vector<1x1x1xf32>
    %c0_39 = arith.constant 0 : index
    %c0_40 = arith.constant 0 : index
    %209 = vector.load %arg2[%c0_39, %c0_40] : memref<16x1xi32, #tpu.memory_space<vmem>>, vector<16x1xi32>
    %210 = tpu.iota {dimensions = array<i32: 1>} : vector<16x8xi32>
    %211 = vector.broadcast %209 : vector<16x1xi32> to vector<16x8xi32>
    %212 = arith.cmpi eq, %211, %210 : vector<16x8xi32>
    %213 = arith.extui %212 : vector<16x8xi1> to vector<16x8xi32>
    %214 = arith.sitofp %213 : vector<16x8xi32> to vector<16x8xf32>
    %c0_41 = arith.constant 0 : index
    %c0_42 = arith.constant 0 : index
    %215 = vector.load %arg4[%c0_41, %c0_42] : memref<16x1xi32, #tpu.memory_space<vmem>>, vector<16x1xi32>
    %c0_43 = arith.constant 0 : index
    %c0_44 = arith.constant 0 : index
    %216 = vector.load %arg3[%c0_43, %c0_44] : memref<16x1xi32, #tpu.memory_space<vmem>>, vector<16x1xi32>
    %217 = arith.cmpi slt, %215, %216 : vector<16x1xi32>
    %218 = arith.extui %217 : vector<16x1xi1> to vector<16x1xi32>
    %219 = arith.sitofp %218 : vector<16x1xi32> to vector<16x1xf32>
    %c0_45 = arith.constant 0 : index
    %c0_46 = arith.constant 0 : index
    %220 = vector.load %arg4[%c0_45, %c0_46] : memref<16x1xi32, #tpu.memory_space<vmem>>, vector<16x1xi32>
    %c0_47 = arith.constant 0 : index
    %c0_48 = arith.constant 0 : index
    %221 = vector.load %arg3[%c0_47, %c0_48] : memref<16x1xi32, #tpu.memory_space<vmem>>, vector<16x1xi32>
    %c1_i32_49 = arith.constant 1 : i32
    %222 = vector.broadcast %c1_i32_49 : i32 to vector<16x1xi32>
    %223 = arith.subi %221, %222 : vector<16x1xi32>
    %224 = arith.cmpi eq, %220, %223 : vector<16x1xi32>
    %225 = arith.extui %224 : vector<16x1xi1> to vector<16x1xi32>
    %226 = arith.sitofp %225 : vector<16x1xi32> to vector<16x1xf32>
    %227 = arith.mulf %25, %214 : vector<16x8xf32>
    %228 = vector.broadcast %219 : vector<16x1xf32> to vector<16x8xf32>
    %229 = arith.mulf %227, %228 : vector<16x8xf32>
    %230 = vector.shape_cast %229 : vector<16x8xf32> to vector<1x16x8xf32>
    %cst_50 = arith.constant dense<0.000000e+00> : vector<1xf32>
    %231 = vector.multi_reduction <add>, %230, %cst_50 [1, 2] : vector<1x16x8xf32> to vector<1xf32>
    %232 = vector.shape_cast %231 : vector<1xf32> to vector<1x1x1xf32>
    %233 = vector.extract %232[0, 0, 0] : f32 from vector<1x1x1xf32>
    %234 = vector.extract_strided_slice %214 {offsets = [0, 0], sizes = [2, 8], strides = [1, 1]} : vector<16x8xf32> to vector<2x8xf32>
    %235 = vector.broadcast %27 : vector<1x8xf32> to vector<2x8xf32>
    %236 = arith.mulf %234, %235 : vector<2x8xf32>
    %237 = vector.shape_cast %236 : vector<2x8xf32> to vector<1x2x8xf32>
    %cst_51 = arith.constant dense<0.000000e+00> : vector<1xf32>
    %238 = vector.multi_reduction <add>, %237, %cst_51 [1, 2] : vector<1x2x8xf32> to vector<1xf32>
    %239 = vector.shape_cast %238 : vector<1xf32> to vector<1x1x1xf32>
    %240 = vector.extract %239[0, 0, 0] : f32 from vector<1x1x1xf32>
    %cst_52 = arith.constant dense<0.000000e+00> : vector<16x8xf32>
    %241 = tpu.matmul %214, %26, %cst_52 {dimension_numbers = #tpu.dot_dimension_numbers<[1], [0], [0], [1], [0, 0, 1, 1], [], []>} : vector<16x8xf32>, vector<8x8xf32>, vector<16x8xf32> -> vector<16x8xf32>
    %242 = vector.extract_strided_slice %241 {offsets = [0, 0], sizes = [14, 8], strides = [1, 1]} : vector<16x8xf32> to vector<14x8xf32>
    %243 = vector.extract_strided_slice %214 {offsets = [2, 0], sizes = [14, 8], strides = [1, 1]} : vector<16x8xf32> to vector<14x8xf32>
    %244 = arith.mulf %242, %243 : vector<14x8xf32>
    %245 = vector.extract_strided_slice %219 {offsets = [2, 0], sizes = [14, 1], strides = [1, 1]} : vector<16x1xf32> to vector<14x1xf32>
    %246 = vector.broadcast %245 : vector<14x1xf32> to vector<14x8xf32>
    %247 = arith.mulf %244, %246 : vector<14x8xf32>
    %248 = vector.shape_cast %247 : vector<14x8xf32> to vector<1x14x8xf32>
    %cst_53 = arith.constant dense<0.000000e+00> : vector<1xf32>
    %249 = vector.multi_reduction <add>, %248, %cst_53 [1, 2] : vector<1x14x8xf32> to vector<1xf32>
    %250 = vector.shape_cast %249 : vector<1xf32> to vector<1x1x1xf32>
    %251 = vector.extract %250[0, 0, 0] : f32 from vector<1x1x1xf32>
    %252 = vector.broadcast %226 : vector<16x1xf32> to vector<16x8xf32>
    %253 = arith.mulf %214, %252 : vector<16x8xf32>
    %254 = vector.broadcast %28 : vector<1x8xf32> to vector<16x8xf32>
    %255 = arith.mulf %253, %254 : vector<16x8xf32>
    %256 = vector.shape_cast %255 : vector<16x8xf32> to vector<1x16x8xf32>
    %cst_54 = arith.constant dense<0.000000e+00> : vector<1xf32>
    %257 = vector.multi_reduction <add>, %256, %cst_54 [1, 2] : vector<1x16x8xf32> to vector<1xf32>
    %258 = vector.shape_cast %257 : vector<1xf32> to vector<1x1x1xf32>
    %259 = vector.extract %258[0, 0, 0] : f32 from vector<1x1x1xf32>
    %260 = arith.addf %233, %240 : f32
    %261 = arith.addf %260, %251 : f32
    %262 = arith.addf %261, %259 : f32
    %263 = arith.subf %208, %262 : f32
    %c0_55 = arith.constant 0 : index
    %c0_56 = arith.constant 0 : index
    %264 = memref.load %arg12[%c0_55, %c0_56] : memref<1x1xf32, #tpu.memory_space<smem>>
    memref.store %263, %arg12[%c0_55, %c0_56] : memref<1x1xf32, #tpu.memory_space<smem>>
    return
  }
}

</mosaic_0001>

<llo_original>
// kernel: transformers_crf_forward.1
$region0: #{transformers_crf_forward.1}
  #allocation0 [shape = 'u32[]', space=smem, size = 0x4, offset = 0x4, fixed_abs, tag = 'smem constant byte address 0x4 - core index']
  #allocation1 [shape = 'u32[72,128]{1,0:T(1,128)}', space=vmem, size = 0x9000, scoped, tag = 'internal scratch']
  %s0 = inlined_call_operand.vmem [shape: s32[20,1], index: 0, kind: input, shape index: {}]
  %s1 = inlined_call_operand.vmem [shape: s32[16,1], index: 1, kind: input, shape index: {}]
  %s2 = inlined_call_operand.vmem [shape: s32[16,1], index: 2, kind: input, shape index: {}]
  %s3 = inlined_call_operand.vmem [shape: s32[16,1], index: 3, kind: input, shape index: {}]
  %s4 = inlined_call_operand.vmem [shape: s32[16,1], index: 4, kind: input, shape index: {}]
  %s5 = inlined_call_operand.vmem [shape: f32[50,32], index: 5, kind: input, shape index: {}]
  %s6 = inlined_call_operand.vmem [shape: f32[32,32], index: 6, kind: input, shape index: {}]
  %s7 = inlined_call_operand.vmem [shape: f32[1,32], index: 7, kind: input, shape index: {}]
  %s8 = inlined_call_operand.vmem [shape: f32[32,8], index: 8, kind: input, shape index: {}]
  %s9 = inlined_call_operand.vmem [shape: f32[1,8], index: 9, kind: input, shape index: {}]
  %s10 = inlined_call_operand.vmem [shape: f32[8,8], index: 10, kind: input, shape index: {}]
  %s11 = inlined_call_operand.vmem [shape: f32[1,8], index: 11, kind: input, shape index: {}]
  %s12 = inlined_call_operand.hbm [shape: f32[1,1], index: 12, kind: output, shape index: {}]
  %s13 = sld [smem:[#allocation0]]
  $region58: #{transformers_crf_forward.1} parent=0
    _
  %s15 = ssub.s32 1, %s13
  %s16 = scalar_select 0, %s15, %s13
  $region1: #{transformers_crf_forward.1} parent=0
    #allocation2 [shape = 'u8[512]{0}', space=smem, size = 0x200, scoped, tag = 'output window, operand 0, single buffered']
    #allocation3 [shape = 's32[1]{0}', space=sflag, size = 0x4, scoped, tag = 'scoped memory for transformers_crf_forward.1']
    %17 = vsyncpa [#allocation3], 0
    // Predicated region
    $region2: #{transformers_crf_forward.1} parent=1 // pred_check
      _
    $region3: #{transformers_crf_forward.1} parent=1 // pred_check_branch
      %19 = sbr.rel (0) target = $region5
    $region4: #{transformers_crf_forward.1} parent=1 // pred_region
      _
    $region5: #{transformers_crf_forward.1} parent=1 // pred_fallthru
      _
    // Predicated region
    $region6: #{transformers_crf_forward.1} parent=1 // pred_check
      _
    $region7: #{transformers_crf_forward.1} parent=1 // pred_check_branch
      %21 = sbr.rel (0) target = $region9
    $region8: #{transformers_crf_forward.1} parent=1 // pred_region
      _
    $region9: #{transformers_crf_forward.1} parent=1 // pred_fallthru
      _
    // Predicated region
    $region10: #{transformers_crf_forward.1} parent=1 // pred_check
      _
    $region11: #{transformers_crf_forward.1} parent=1 // pred_check_branch
      %23 = sbr.rel (0) target = $region13
    $region12: #{transformers_crf_forward.1} parent=1 // pred_region
      _
    $region13: #{transformers_crf_forward.1} parent=1 // pred_fallthru
      _
    // Predicated region
    $region14: #{transformers_crf_forward.1} parent=1 // pred_check
      _
    $region15: #{transformers_crf_forward.1} parent=1 // pred_check_branch
      %25 = sbr.rel (0) target = $region17
    $region16: #{transformers_crf_forward.1} parent=1 // pred_region
      _
    $region17: #{transformers_crf_forward.1} parent=1 // pred_fallthru
      _
    // Predicated region
    $region18: #{transformers_crf_forward.1} parent=1 // pred_check
      _
    $region19: #{transformers_crf_forward.1} parent=1 // pred_check_branch
      %27 = sbr.rel (0) target = $region21
    $region20: #{transformers_crf_forward.1} parent=1 // pred_region
      _
    $region21: #{transformers_crf_forward.1} parent=1 // pred_fallthru
      _
    // Predicated region
    $region22: #{transformers_crf_forward.1} parent=1 // pred_check
      _
    $region23: #{transformers_crf_forward.1} parent=1 // pred_check_branch
      %29 = sbr.rel (0) target = $region25
    $region24: #{transformers_crf_forward.1} parent=1 // pred_region
      _
    $region25: #{transformers_crf_forward.1} parent=1 // pred_fallthru
      _
    // Predicated region
    $region26: #{transformers_crf_forward.1} parent=1 // pred_check
      _
    $region27: #{transformers_crf_forward.1} parent=1 // pred_check_branch
      %31 = sbr.rel (0) target = $region29
    $region28: #{transformers_crf_forward.1} parent=1 // pred_region
      _
    $region29: #{transformers_crf_forward.1} parent=1 // pred_fallthru
      _
    // Predicated region
    $region30: #{transformers_crf_forward.1} parent=1 // pred_check
      _
    $region31: #{transformers_crf_forward.1} parent=1 // pred_check_branch
      %33 = sbr.rel (0) target = $region33
    $region32: #{transformers_crf_forward.1} parent=1 // pred_region
      _
    $region33: #{transformers_crf_forward.1} parent=1 // pred_fallthru
      _
    // Predicated region
    $region34: #{transformers_crf_forward.1} parent=1 // pred_check
      _
    $region35: #{transformers_crf_forward.1} parent=1 // pred_check_branch
      %35 = sbr.rel (0) target = $region37
    $region36: #{transformers_crf_forward.1} parent=1 // pred_region
      _
    $region37: #{transformers_crf_forward.1} parent=1 // pred_fallthru
      _
    // Predicated region
    $region38: #{transformers_crf_forward.1} parent=1 // pred_check
      _
    $region39: #{transformers_crf_forward.1} parent=1 // pred_check_branch
      %37 = sbr.rel (0) target = $region41
    $region40: #{transformers_crf_forward.1} parent=1 // pred_region
      _
    $region41: #{transformers_crf_forward.1} parent=1 // pred_fallthru
      _
    // Predicated region
    $region42: #{transformers_crf_forward.1} parent=1 // pred_check
      _
    $region43: #{transformers_crf_forward.1} parent=1 // pred_check_branch
      %39 = sbr.rel (0) target = $region45
    $region44: #{transformers_crf_forward.1} parent=1 // pred_region
      _
    $region45: #{transformers_crf_forward.1} parent=1 // pred_fallthru
      _
    // Predicated region
    $region46: #{transformers_crf_forward.1} parent=1 // pred_check
      _
    $region47: #{transformers_crf_forward.1} parent=1 // pred_check_branch
      %41 = sbr.rel (0) target = $region49
    $region48: #{transformers_crf_forward.1} parent=1 // pred_region
      _
    $region49: #{transformers_crf_forward.1} parent=1 // pred_fallthru
      _
    %v42 = vld [vmem:[%s0] sm:$0xff]
    %v43 = vld [vmem:[%s0 + $0x8] sm:$0xff]
    %v44 = vld [vmem:[%s0 + $0x10] sm:$0xf]
    %v45 = vlaneseq
    %v46 = vand.u32 %v45, 127
    %47 = vset.pattern.permute.xlu0 0
    %48 = vperm.xlu0 %47, %v42
    %v49 = vpop.permute.xlu0 %48
    %50 = vset.pattern.permute.xlu0 0
    %51 = vperm.xlu0 %50, %v43
    %v52 = vpop.permute.xlu0 %51
    %53 = vset.pattern.permute.xlu0 0
    %54 = vperm.xlu0 %53, %v44
    %v55 = vpop.permute.xlu0 %54
    %vm56 = vcmp.eq.s32.totalorder %v49, %v46
    %vm57 = vcmp.eq.s32.totalorder %v52, %v46
    %vm58 = vcmp.eq.s32.totalorder %v55, %v46
    %v59 = vsel %vm56, 1, 0
    %v60 = vsel %vm57, 1, 0
    %v61 = vsel %vm58, 1, 0
    %v62 = vcvt.s32.f32 %v59
    %v63 = vcvt.s32.f32 %v60
    %v64 = vcvt.s32.f32 %v61
    %v65 = vld [vmem:[%s5] sm:$0xff]
    %v66 = vld [vmem:[%s5 + $0x8] sm:$0xff]
    %v67 = vld [vmem:[%s5 + $0x10] sm:$0xff]
    %v68 = vld [vmem:[%s5 + $0x18] sm:$0xff]
    %v69 = vld [vmem:[%s5 + $0x20] sm:$0xff]
    %v70 = vld [vmem:[%s5 + $0x28] sm:$0xff]
    %v71 = vld [vmem:[%s5 + $0x30] sm:$0x3]
    %vm72 = vcmask 408576
    %v74 = vsel %vm72, %v62, 0
    %v77 = vsel %vm72, %v63, 0
    %v80 = vsel %vm72, %v64, 0
    %vm82 = vcmask 1041408
    %v84 = vsel %vm82, %v71, 0
    %86 = vmatpush.msra.mxu0 0.0
    %87 = vmatpush.msra.mxu0 0.0
    %88 = vmatpush.msra.mxu0 0.0
    %89 = vmatpush.msra.mxu0 0.0
    %90 = vmatpush.msra.mxu0 0.0
    %91 = vmatpush.msra.mxu0 0.0
    %92 = vmatpush.msra.mxu0 0.0
    %93 = vmatpush.msra.mxu0 0.0
    %94 = vmatpush.msra.mxu0 0.0
    %95 = vmatpush.msra.mxu0 %v84
    %96 = vmatpush.msra.mxu0 %v70
    %97 = vmatpush.msra.mxu0 %v69
    %98 = vmatpush.msra.mxu0 %v68
    %99 = vmatpush.msra.mxu0 %v67
    %100 = vmatpush.msra.mxu0 %v66
    %101 = vmatpush.msra.mxu0 %v65
    %102 = vmatmul.f32.gmra.mxu0 %v74
    %v103 = vpop.f32.mrf.mxu0
    %v104 = vadd.f32 0.0, %v103
    %105 = vmatmul.f32.gmra.mxu0 %v77
    %v106 = vpop.f32.mrf.mxu0
    %v107 = vadd.f32 0.0, %v106
    %108 = vmatmul.f32.gmra.mxu0 %v80
    %v109 = vpop.f32.mrf.mxu0
    %v110 = vadd.f32 0.0, %v109
    %111 = vdwg.mxu0
    %v112 = vld [vmem:[%s6] sm:$0xff]
    %v113 = vld [vmem:[%s6 + $0x8] sm:$0xff]
    %v114 = vld [vmem:[%s6 + $0x10] sm:$0xff]
    %v115 = vld [vmem:[%s6 + $0x18] sm:$0xff]
    %v116 = vld [vmem:[%s7] sm:$0x1]
    %v118 = vperm.slane %v116, 0
    %vm120 = vcmask 261120
    %v122 = vsel %vm120, %v104, 0
    %v125 = vsel %vm120, %v107, 0
    %v128 = vsel %vm120, %v110, 0
    %130 = vmatpush.msra.mxu0 0.0
    %131 = vmatpush.msra.mxu0 0.0
    %132 = vmatpush.msra.mxu0 0.0
    %133 = vmatpush.msra.mxu0 0.0
    %134 = vmatpush.msra.mxu0 0.0
    %135 = vmatpush.msra.mxu0 0.0
    %136 = vmatpush.msra.mxu0 0.0
    %137 = vmatpush.msra.mxu0 0.0
    %138 = vmatpush.msra.mxu0 0.0
    %139 = vmatpush.msra.mxu0 0.0
    %140 = vmatpush.msra.mxu0 0.0
    %141 = vmatpush.msra.mxu0 0.0
    %142 = vmatpush.msra.mxu0 %v115
    %143 = vmatpush.msra.mxu0 %v114
    %144 = vmatpush.msra.mxu0 %v113
    %145 = vmatpush.msra.mxu0 %v112
    %146 = vmatmul.f32.gmra.mxu0 %v122
    %v147 = vpop.f32.mrf.mxu0
    %v148 = vadd.f32 %v118, %v147
    %149 = vmatmul.f32.gmra.mxu0 %v125
    %v150 = vpop.f32.mrf.mxu0
    %v151 = vadd.f32 %v118, %v150
    %152 = vmatmul.f32.gmra.mxu0 %v128
    %v153 = vpop.f32.mrf.mxu0
    %v154 = vadd.f32 %v118, %v153
    %155 = vdwg.mxu0
    %v156 = vtanh.pop %v148
    %v157 = vtanh.pop %v151
    %v158 = vtanh.pop %v154
    %v159 = vld [vmem:[%s1] sm:$0xff]
    %v160 = vld [vmem:[%s1 + $0x8] sm:$0xff]
    %161 = vset.pattern.permute.xlu0 0
    %162 = vperm.xlu0 %161, %v159
    %v163 = vpop.permute.xlu0 %162
    %164 = vset.pattern.permute.xlu0 0
    %165 = vperm.xlu0 %164, %v160
    %v166 = vpop.permute.xlu0 %165
    %vm167 = vcmp.eq.s32.totalorder %v163, %v46
    %vm168 = vcmp.eq.s32.totalorder %v166, %v46
    %v169 = vsel %vm167, 1, 0
    %v170 = vsel %vm168, 1, 0
    %v171 = vcvt.s32.f32 %v169
    %v172 = vcvt.s32.f32 %v170
    %vm173 = vcmask 162816
    %v175 = vsel %vm173, %v171, 0
    %v178 = vsel %vm173, %v172, 0
    %vm180 = vcmask 1043456
    %v182 = vsel %vm180, %v158, 0
    %184 = vmatpush.msra.mxu0 0.0
    %185 = vmatpush.msra.mxu0 0.0
    %186 = vmatpush.msra.mxu0 0.0
    %187 = vmatpush.msra.mxu0 0.0
    %188 = vmatpush.msra.mxu0 0.0
    %189 = vmatpush.msra.mxu0 0.0
    %190 = vmatpush.msra.mxu0 0.0
    %191 = vmatpush.msra.mxu0 0.0
    %192 = vmatpush.msra.mxu0 0.0
    %193 = vmatpush.msra.mxu0 0.0
    %194 = vmatpush.msra.mxu0 0.0
    %195 = vmatpush.msra.mxu0 0.0
    %196 = vmatpush.msra.mxu0 0.0
    %197 = vmatpush.msra.mxu0 %v182
    %198 = vmatpush.msra.mxu0 %v157
    %199 = vmatpush.msra.mxu0 %v156
    %200 = vmatmul.f32.gmra.mxu0 %v175
    %v201 = vpop.f32.mrf.mxu0
    %v202 = vadd.f32 0.0, %v201
    %203 = vmatmul.f32.gmra.mxu0 %v178
    %v204 = vpop.f32.mrf.mxu0
    %v205 = vadd.f32 0.0, %v204
    %206 = vdwg.mxu0
    %v207 = vld [vmem:[%s8] sm:$0xff]
    %v208 = vld [vmem:[%s8 + $0x8] sm:$0xff]
    %v209 = vld [vmem:[%s8 + $0x10] sm:$0xff]
    %v210 = vld [vmem:[%s8 + $0x18] sm:$0xff]
    %v211 = vld [vmem:[%s9] sm:$0x1]
    %v213 = vperm.slane %v211, 0
    %v216 = vsel %vm120, %v202, 0
    %v219 = vsel %vm120, %v205, 0
    %221 = vmatpush.msra.mxu0 0.0
    %222 = vmatpush.msra.mxu0 0.0
    %223 = vmatpush.msra.mxu0 0.0
    %224 = vmatpush.msra.mxu0 0.0
    %225 = vmatpush.msra.mxu0 0.0
    %226 = vmatpush.msra.mxu0 0.0
    %227 = vmatpush.msra.mxu0 0.0
    %228 = vmatpush.msra.mxu0 0.0
    %229 = vmatpush.msra.mxu0 0.0
    %230 = vmatpush.msra.mxu0 0.0
    %231 = vmatpush.msra.mxu0 0.0
    %232 = vmatpush.msra.mxu0 0.0
    %233 = vmatpush.msra.mxu0 %v210
    %234 = vmatpush.msra.mxu0 %v209
    %235 = vmatpush.msra.mxu0 %v208
    %236 = vmatpush.msra.mxu0 %v207
    %237 = vmatmul.f32.gmra.mxu0 %v216
    %v238 = vpop.f32.mrf.mxu0
    %v239 = vadd.f32 %v213, %v238
    %240 = vmatmul.f32.gmra.mxu0 %v219
    %v241 = vpop.f32.mrf.mxu0
    %v242 = vadd.f32 %v213, %v241
    %243 = vdwg.mxu0
    %v244 = vld [vmem:[%s10] sm:$0xff]
    %v245 = vld [vmem:[%s11] sm:$0x1]
    %v246 = vld [vmem:[%s3] sm:$0x3]
    %v247 = vperm.slane %v244, 6
    %v248 = vadd.f32 %v247, %v239
    %v249 = vperm.slane %v248, 0
    %v250 = vlaneseq
    %v251 = vshrl.u32 %v250, 7
    %253 = vset.pattern.permute.xlu0 %v251
    %254 = vperm.xlu0 %253, %v249
    %v255 = vpop.permute.xlu0 %254
    %v256 = vperm.slane %v248, 1
    %v257 = vlaneseq
    %v258 = vshrl.u32 %v257, 7
    %260 = vset.pattern.permute.xlu0 %v258
    %261 = vperm.xlu0 %260, %v256
    %v262 = vpop.permute.xlu0 %261
    %v263 = vadd.f32 %v255, %v244
    %v264 = vadd.f32 %v262, %v244
    %266 = vst [vmem:[#allocation1] sm:$0xff] %v239
    %s267 = scalar_lea.vmem [#allocation1], 2
    %v268 = vld [vmem:[%s267] ss:$9 sm:$0xff]
    %s269 = scalar_lea.vmem [#allocation1], 3
    %v270 = vld [vmem:[%s269] ss:$9 sm:$0xff]
    %v271 = vperm.slane %v268, 0
    %v272 = vperm.slane %v270, 0
    %v275 = vadd.f32 %v263, %v271
    %v276 = vadd.f32 %v264, %v272
    %vm277 = vcmask 64512
    %v278 = vsel %vm277, %v275, -inf
    %v279 = vrot.slane %v278, 4
    %v280 = vmax.f32 %v278, %v279
    %v281 = vrot.slane %v280, 2
    %v282 = vmax.f32 %v280, %v281
    %v283 = vrot.slane %v282, 1
    %v284 = vmax.f32 %v282, %v283
    %v285 = vsel %vm277, %v276, -inf
    %v286 = vrot.slane %v285, 4
    %v287 = vmax.f32 %v285, %v286
    %v288 = vrot.slane %v287, 2
    %v289 = vmax.f32 %v287, %v288
    %v290 = vrot.slane %v289, 1
    %v291 = vmax.f32 %v289, %v290
    %v292 = vsub.f32 %v275, %v284
    %v293 = vsub.f32 %v276, %v291
    %v294 = vmul.f32 %v292, 1.442695
    %v295 = vpow.pop %v294
    %v296 = vmul.f32 %v293, 1.442695
    %v297 = vpow.pop %v296
    %v298 = vsel %vm277, %v295, 0.0
    %v299 = vrot.slane %v298, 4
    %v300 = vadd.f32 %v298, %v299
    %v301 = vrot.slane %v300, 2
    %v302 = vadd.f32 %v300, %v301
    %v303 = vrot.slane %v302, 1
    %v304 = vadd.f32 %v302, %v303
    %v305 = vsel %vm277, %v297, 0.0
    %v306 = vrot.slane %v305, 4
    %v307 = vadd.f32 %v305, %v306
    %v308 = vrot.slane %v307, 2
    %v309 = vadd.f32 %v307, %v308
    %v310 = vrot.slane %v309, 1
    %v311 = vadd.f32 %v309, %v310
    %v312 = vlog2.pop %v304
    %v313 = vmul.f32 %v312, 0.6931472
    %v314 = vlog2.pop %v311
    %v315 = vmul.f32 %v314, 0.6931472
    %v316 = vadd.f32 %v284, %v313
    %v317 = vadd.f32 %v291, %v315
    %vm318 = vcmp.gt.s32.totalorder %v246, 1
    %v319 = vsel %vm318, 1, 0
    %320 = vset.pattern.permute.xlu0 0
    %321 = vperm.xlu0 %320, %v319
    %v322 = vpop.permute.xlu0 %321
    %vm323 = vcmp.eq.s32.totalorder %v322, 1
    %vm326 = vcmask 1041409
    %v327 = vsel %vm326, %v317, %v316
    %v329 = vsel %vm323, %v327, %v248
    %v330 = vperm.slane %v329, 0
    %v331 = vlaneseq
    %v332 = vshrl.u32 %v331, 7
    %334 = vset.pattern.permute.xlu0 %v332
    %335 = vperm.xlu0 %334, %v330
    %v336 = vpop.permute.xlu0 %335
    %v337 = vperm.slane %v329, 1
    %v338 = vlaneseq
    %v339 = vshrl.u32 %v338, 7
    %341 = vset.pattern.permute.xlu0 %v339
    %342 = vperm.xlu0 %341, %v337
    %v343 = vpop.permute.xlu0 %342
    %v344 = vadd.f32 %v336, %v244
    %v345 = vadd.f32 %v343, %v244
    %346 = vst [vmem:[#allocation1] sm:$0xff] %v239
    %s347 = scalar_lea.vmem [#allocation1], 4
    %v348 = vld [vmem:[%s347] ss:$9 sm:$0xff]
    %s349 = scalar_lea.vmem [#allocation1], 5
    %v350 = vld [vmem:[%s349] ss:$9 sm:$0xff]
    %v351 = vperm.slane %v348, 0
    %v352 = vperm.slane %v350, 0
    %v355 = vadd.f32 %v344, %v351
    %v356 = vadd.f32 %v345, %v352
    %v357 = vsel %vm277, %v355, -inf
    %v358 = vrot.slane %v357, 4
    %v359 = vmax.f32 %v357, %v358
    %v360 = vrot.slane %v359, 2
    %v361 = vmax.f32 %v359, %v360
    %v362 = vrot.slane %v361, 1
    %v363 = vmax.f32 %v361, %v362
    %v364 = vsel %vm277, %v356, -inf
    %v365 = vrot.slane %v364, 4
    %v366 = vmax.f32 %v364, %v365
    %v367 = vrot.slane %v366, 2
    %v368 = vmax.f32 %v366, %v367
    %v369 = vrot.slane %v368, 1
    %v370 = vmax.f32 %v368, %v369
    %v371 = vsub.f32 %v355, %v363
    %v372 = vsub.f32 %v356, %v370
    %v373 = vmul.f32 %v371, 1.442695
    %v374 = vpow.pop %v373
    %v375 = vmul.f32 %v372, 1.442695
    %v376 = vpow.pop %v375
    %v377 = vsel %vm277, %v374, 0.0
    %v378 = vrot.slane %v377, 4
    %v379 = vadd.f32 %v377, %v378
    %v380 = vrot.slane %v379, 2
    %v381 = vadd.f32 %v379, %v380
    %v382 = vrot.slane %v381, 1
    %v383 = vadd.f32 %v381, %v382
    %v384 = vsel %vm277, %v376, 0.0
    %v385 = vrot.slane %v384, 4
    %v386 = vadd.f32 %v384, %v385
    %v387 = vrot.slane %v386, 2
    %v388 = vadd.f32 %v386, %v387
    %v389 = vrot.slane %v388, 1
    %v390 = vadd.f32 %v388, %v389
    %v391 = vlog2.pop %v383
    %v392 = vmul.f32 %v391, 0.6931472
    %v393 = vlog2.pop %v390
    %v394 = vmul.f32 %v393, 0.6931472
    %v395 = vadd.f32 %v363, %v392
    %v396 = vadd.f32 %v370, %v394
    %vm397 = vcmp.gt.s32.totalorder %v246, 2
    %v398 = vsel %vm397, 1, 0
    %399 = vset.pattern.permute.xlu0 0
    %400 = vperm.xlu0 %399, %v398
    %v401 = vpop.permute.xlu0 %400
    %vm402 = vcmp.eq.s32.totalorder %v401, 1
    %v405 = vsel %vm326, %v396, %v395
    %v407 = vsel %vm402, %v405, %v329
    %v408 = vperm.slane %v407, 0
    %v409 = vlaneseq
    %v410 = vshrl.u32 %v409, 7
    %412 = vset.pattern.permute.xlu0 %v410
    %413 = vperm.xlu0 %412, %v408
    %v414 = vpop.permute.xlu0 %413
    %v415 = vperm.slane %v407, 1
    %v416 = vlaneseq
    %v417 = vshrl.u32 %v416, 7
    %419 = vset.pattern.permute.xlu0 %v417
    %420 = vperm.xlu0 %419, %v415
    %v421 = vpop.permute.xlu0 %420
    %v422 = vadd.f32 %v414, %v244
    %v423 = vadd.f32 %v421, %v244
    %424 = vst [vmem:[#allocation1] sm:$0xff] %v239
    %s425 = scalar_lea.vmem [#allocation1], 6
    %v426 = vld [vmem:[%s425] ss:$9 sm:$0xff]
    %s427 = scalar_lea.vmem [#allocation1], 7
    %v428 = vld [vmem:[%s427] ss:$9 sm:$0xff]
    %v429 = vperm.slane %v426, 0
    %v430 = vperm.slane %v428, 0
    %v433 = vadd.f32 %v422, %v429
    %v434 = vadd.f32 %v423, %v430
    %v435 = vsel %vm277, %v433, -inf
    %v436 = vrot.slane %v435, 4
    %v437 = vmax.f32 %v435, %v436
    %v438 = vrot.slane %v437, 2
    %v439 = vmax.f32 %v437, %v438
    %v440 = vrot.slane %v439, 1
    %v441 = vmax.f32 %v439, %v440
    %v442 = vsel %vm277, %v434, -inf
    %v443 = vrot.slane %v442, 4
    %v444 = vmax.f32 %v442, %v443
    %v445 = vrot.slane %v444, 2
    %v446 = vmax.f32 %v444, %v445
    %v447 = vrot.slane %v446, 1
    %v448 = vmax.f32 %v446, %v447
    %v449 = vsub.f32 %v433, %v441
    %v450 = vsub.f32 %v434, %v448
    %v451 = vmul.f32 %v449, 1.442695
    %v452 = vpow.pop %v451
    %v453 = vmul.f32 %v450, 1.442695
    %v454 = vpow.pop %v453
    %v455 = vsel %vm277, %v452, 0.0
    %v456 = vrot.slane %v455, 4
    %v457 = vadd.f32 %v455, %v456
    %v458 = vrot.slane %v457, 2
    %v459 = vadd.f32 %v457, %v458
    %v460 = vrot.slane %v459, 1
    %v461 = vadd.f32 %v459, %v460
    %v462 = vsel %vm277, %v454, 0.0
    %v463 = vrot.slane %v462, 4
    %v464 = vadd.f32 %v462, %v463
    %v465 = vrot.slane %v464, 2
    %v466 = vadd.f32 %v464, %v465
    %v467 = vrot.slane %v466, 1
    %v468 = vadd.f32 %v466, %v467
    %v469 = vlog2.pop %v461
    %v470 = vmul.f32 %v469, 0.6931472
    %v471 = vlog2.pop %v468
    %v472 = vmul.f32 %v471, 0.6931472
    %v473 = vadd.f32 %v441, %v470
    %v474 = vadd.f32 %v448, %v472
    %vm475 = vcmp.gt.s32.totalorder %v246, 3
    %v476 = vsel %vm475, 1, 0
    %477 = vset.pattern.permute.xlu0 0
    %478 = vperm.xlu0 %477, %v476
    %v479 = vpop.permute.xlu0 %478
    %vm480 = vcmp.eq.s32.totalorder %v479, 1
    %v483 = vsel %vm326, %v474, %v473
    %v485 = vsel %vm480, %v483, %v407
    %v486 = vperm.slane %v485, 0
    %v487 = vlaneseq
    %v488 = vshrl.u32 %v487, 7
    %490 = vset.pattern.permute.xlu0 %v488
    %491 = vperm.xlu0 %490, %v486
    %v492 = vpop.permute.xlu0 %491
    %v493 = vperm.slane %v485, 1
    %v494 = vlaneseq
    %v495 = vshrl.u32 %v494, 7
    %497 = vset.pattern.permute.xlu0 %v495
    %498 = vperm.xlu0 %497, %v493
    %v499 = vpop.permute.xlu0 %498
    %v500 = vadd.f32 %v492, %v244
    %v501 = vadd.f32 %v499, %v244
    %v503 = vrot.slane %v242, 1
    %v504 = vperm.slane %v242, 0
    %v505 = vperm.slane %v503, 0
    %v508 = vadd.f32 %v500, %v504
    %v509 = vadd.f32 %v501, %v505
    %v510 = vsel %vm277, %v508, -inf
    %v511 = vrot.slane %v510, 4
    %v512 = vmax.f32 %v510, %v511
    %v513 = vrot.slane %v512, 2
    %v514 = vmax.f32 %v512, %v513
    %v515 = vrot.slane %v514, 1
    %v516 = vmax.f32 %v514, %v515
    %v517 = vsel %vm277, %v509, -inf
    %v518 = vrot.slane %v517, 4
    %v519 = vmax.f32 %v517, %v518
    %v520 = vrot.slane %v519, 2
    %v521 = vmax.f32 %v519, %v520
    %v522 = vrot.slane %v521, 1
    %v523 = vmax.f32 %v521, %v522
    %v524 = vsub.f32 %v508, %v516
    %v525 = vsub.f32 %v509, %v523
    %v526 = vmul.f32 %v524, 1.442695
    %v527 = vpow.pop %v526
    %v528 = vmul.f32 %v525, 1.442695
    %v529 = vpow.pop %v528
    %v530 = vsel %vm277, %v527, 0.0
    %v531 = vrot.slane %v530, 4
    %v532 = vadd.f32 %v530, %v531
    %v533 = vrot.slane %v532, 2
    %v534 = vadd.f32 %v532, %v533
    %v535 = vrot.slane %v534, 1
    %v536 = vadd.f32 %v534, %v535
    %v537 = vsel %vm277, %v529, 0.0
    %v538 = vrot.slane %v537, 4
    %v539 = vadd.f32 %v537, %v538
    %v540 = vrot.slane %v539, 2
    %v541 = vadd.f32 %v539, %v540
    %v542 = vrot.slane %v541, 1
    %v543 = vadd.f32 %v541, %v542
    %v544 = vlog2.pop %v536
    %v545 = vmul.f32 %v544, 0.6931472
    %v546 = vlog2.pop %v543
    %v547 = vmul.f32 %v546, 0.6931472
    %v548 = vadd.f32 %v516, %v545
    %v549 = vadd.f32 %v523, %v547
    %vm550 = vcmp.gt.s32.totalorder %v246, 4
    %v551 = vsel %vm550, 1, 0
    %552 = vset.pattern.permute.xlu0 0
    %553 = vperm.xlu0 %552, %v551
    %v554 = vpop.permute.xlu0 %553
    %vm555 = vcmp.eq.s32.totalorder %v554, 1
    %v558 = vsel %vm326, %v549, %v548
    %v560 = vsel %vm555, %v558, %v485
    %v561 = vperm.slane %v560, 0
    %v562 = vlaneseq
    %v563 = vshrl.u32 %v562, 7
    %565 = vset.pattern.permute.xlu0 %v563
    %566 = vperm.xlu0 %565, %v561
    %v567 = vpop.permute.xlu0 %566
    %v568 = vperm.slane %v560, 1
    %v569 = vlaneseq
    %v570 = vshrl.u32 %v569, 7
    %572 = vset.pattern.permute.xlu0 %v570
    %573 = vperm.xlu0 %572, %v568
    %v574 = vpop.permute.xlu0 %573
    %v575 = vadd.f32 %v567, %v244
    %v576 = vadd.f32 %v574, %v244
    %577 = vst [vmem:[#allocation1] sm:$0xff] %v242
    %s578 = scalar_lea.vmem [#allocation1], 2
    %v579 = vld [vmem:[%s578] ss:$9 sm:$0xff]
    %s580 = scalar_lea.vmem [#allocation1], 3
    %v581 = vld [vmem:[%s580] ss:$9 sm:$0xff]
    %v582 = vperm.slane %v579, 0
    %v583 = vperm.slane %v581, 0
    %v586 = vadd.f32 %v575, %v582
    %v587 = vadd.f32 %v576, %v583
    %v588 = vsel %vm277, %v586, -inf
    %v589 = vrot.slane %v588, 4
    %v590 = vmax.f32 %v588, %v589
    %v591 = vrot.slane %v590, 2
    %v592 = vmax.f32 %v590, %v591
    %v593 = vrot.slane %v592, 1
    %v594 = vmax.f32 %v592, %v593
    %v595 = vsel %vm277, %v587, -inf
    %v596 = vrot.slane %v595, 4
    %v597 = vmax.f32 %v595, %v596
    %v598 = vrot.slane %v597, 2
    %v599 = vmax.f32 %v597, %v598
    %v600 = vrot.slane %v599, 1
    %v601 = vmax.f32 %v599, %v600
    %v602 = vsub.f32 %v586, %v594
    %v603 = vsub.f32 %v587, %v601
    %v604 = vmul.f32 %v602, 1.442695
    %v605 = vpow.pop %v604
    %v606 = vmul.f32 %v603, 1.442695
    %v607 = vpow.pop %v606
    %v608 = vsel %vm277, %v605, 0.0
    %v609 = vrot.slane %v608, 4
    %v610 = vadd.f32 %v608, %v609
    %v611 = vrot.slane %v610, 2
    %v612 = vadd.f32 %v610, %v611
    %v613 = vrot.slane %v612, 1
    %v614 = vadd.f32 %v612, %v613
    %v615 = vsel %vm277, %v607, 0.0
    %v616 = vrot.slane %v615, 4
    %v617 = vadd.f32 %v615, %v616
    %v618 = vrot.slane %v617, 2
    %v619 = vadd.f32 %v617, %v618
    %v620 = vrot.slane %v619, 1
    %v621 = vadd.f32 %v619, %v620
    %v622 = vlog2.pop %v614
    %v623 = vmul.f32 %v622, 0.6931472
    %v624 = vlog2.pop %v621
    %v625 = vmul.f32 %v624, 0.6931472
    %v626 = vadd.f32 %v594, %v623
    %v627 = vadd.f32 %v601, %v625
    %vm628 = vcmp.gt.s32.totalorder %v246, 5
    %v629 = vsel %vm628, 1, 0
    %630 = vset.pattern.permute.xlu0 0
    %631 = vperm.xlu0 %630, %v629
    %v632 = vpop.permute.xlu0 %631
    %vm633 = vcmp.eq.s32.totalorder %v632, 1
    %v636 = vsel %vm326, %v627, %v626
    %v638 = vsel %vm633, %v636, %v560
    %v639 = vperm.slane %v638, 0
    %v640 = vlaneseq
    %v641 = vshrl.u32 %v640, 7
    %643 = vset.pattern.permute.xlu0 %v641
    %644 = vperm.xlu0 %643, %v639
    %v645 = vpop.permute.xlu0 %644
    %v646 = vperm.slane %v638, 1
    %v647 = vlaneseq
    %v648 = vshrl.u32 %v647, 7
    %650 = vset.pattern.permute.xlu0 %v648
    %651 = vperm.xlu0 %650, %v646
    %v652 = vpop.permute.xlu0 %651
    %v653 = vadd.f32 %v645, %v244
    %v654 = vadd.f32 %v652, %v244
    %655 = vst [vmem:[#allocation1] sm:$0xff] %v242
    %s656 = scalar_lea.vmem [#allocation1], 4
    %v657 = vld [vmem:[%s656] ss:$9 sm:$0xff]
    %s658 = scalar_lea.vmem [#allocation1], 5
    %v659 = vld [vmem:[%s658] ss:$9 sm:$0xff]
    %v660 = vperm.slane %v657, 0
    %v661 = vperm.slane %v659, 0
    %v664 = vadd.f32 %v653, %v660
    %v665 = vadd.f32 %v654, %v661
    %v666 = vsel %vm277, %v664, -inf
    %v667 = vrot.slane %v666, 4
    %v668 = vmax.f32 %v666, %v667
    %v669 = vrot.slane %v668, 2
    %v670 = vmax.f32 %v668, %v669
    %v671 = vrot.slane %v670, 1
    %v672 = vmax.f32 %v670, %v671
    %v673 = vsel %vm277, %v665, -inf
    %v674 = vrot.slane %v673, 4
    %v675 = vmax.f32 %v673, %v674
    %v676 = vrot.slane %v675, 2
    %v677 = vmax.f32 %v675, %v676
    %v678 = vrot.slane %v677, 1
    %v679 = vmax.f32 %v677, %v678
    %v680 = vsub.f32 %v664, %v672
    %v681 = vsub.f32 %v665, %v679
    %v682 = vmul.f32 %v680, 1.442695
    %v683 = vpow.pop %v682
    %v684 = vmul.f32 %v681, 1.442695
    %v685 = vpow.pop %v684
    %v686 = vsel %vm277, %v683, 0.0
    %v687 = vrot.slane %v686, 4
    %v688 = vadd.f32 %v686, %v687
    %v689 = vrot.slane %v688, 2
    %v690 = vadd.f32 %v688, %v689
    %v691 = vrot.slane %v690, 1
    %v692 = vadd.f32 %v690, %v691
    %v693 = vsel %vm277, %v685, 0.0
    %v694 = vrot.slane %v693, 4
    %v695 = vadd.f32 %v693, %v694
    %v696 = vrot.slane %v695, 2
    %v697 = vadd.f32 %v695, %v696
    %v698 = vrot.slane %v697, 1
    %v699 = vadd.f32 %v697, %v698
    %v700 = vlog2.pop %v692
    %v701 = vmul.f32 %v700, 0.6931472
    %v702 = vlog2.pop %v699
    %v703 = vmul.f32 %v702, 0.6931472
    %v704 = vadd.f32 %v672, %v701
    %v705 = vadd.f32 %v679, %v703
    %vm706 = vcmp.gt.s32.totalorder %v246, 6
    %v707 = vsel %vm706, 1, 0
    %708 = vset.pattern.permute.xlu0 0
    %709 = vperm.xlu0 %708, %v707
    %v710 = vpop.permute.xlu0 %709
    %vm711 = vcmp.eq.s32.totalorder %v710, 1
    %v714 = vsel %vm326, %v705, %v704
    %v716 = vsel %vm711, %v714, %v638
    %v717 = vperm.slane %v716, 0
    %v718 = vlaneseq
    %v719 = vshrl.u32 %v718, 7
    %721 = vset.pattern.permute.xlu0 %v719
    %722 = vperm.xlu0 %721, %v717
    %v723 = vpop.permute.xlu0 %722
    %v724 = vperm.slane %v716, 1
    %v725 = vlaneseq
    %v726 = vshrl.u32 %v725, 7
    %728 = vset.pattern.permute.xlu0 %v726
    %729 = vperm.xlu0 %728, %v724
    %v730 = vpop.permute.xlu0 %729
    %v731 = vadd.f32 %v723, %v244
    %v732 = vadd.f32 %v730, %v244
    %733 = vst [vmem:[#allocation1] sm:$0xff] %v242
    %s734 = scalar_lea.vmem [#allocation1], 6
    %v735 = vld [vmem:[%s734] ss:$9 sm:$0xff]
    %s736 = scalar_lea.vmem [#allocation1], 7
    %v737 = vld [vmem:[%s736] ss:$9 sm:$0xff]
    %v738 = vperm.slane %v735, 0
    %v739 = vperm.slane %v737, 0
    %v742 = vadd.f32 %v731, %v738
    %v743 = vadd.f32 %v732, %v739
    %v744 = vsel %vm277, %v742, -inf
    %v745 = vrot.slane %v744, 4
    %v746 = vmax.f32 %v744, %v745
    %v747 = vrot.slane %v746, 2
    %v748 = vmax.f32 %v746, %v747
    %v749 = vrot.slane %v748, 1
    %v750 = vmax.f32 %v748, %v749
    %v751 = vsel %vm277, %v743, -inf
    %v752 = vrot.slane %v751, 4
    %v753 = vmax.f32 %v751, %v752
    %v754 = vrot.slane %v753, 2
    %v755 = vmax.f32 %v753, %v754
    %v756 = vrot.slane %v755, 1
    %v757 = vmax.f32 %v755, %v756
    %v758 = vsub.f32 %v742, %v750
    %v759 = vsub.f32 %v743, %v757
    %v760 = vmul.f32 %v758, 1.442695
    %v761 = vpow.pop %v760
    %v762 = vmul.f32 %v759, 1.442695
    %v763 = vpow.pop %v762
    %v764 = vsel %vm277, %v761, 0.0
    %v765 = vrot.slane %v764, 4
    %v766 = vadd.f32 %v764, %v765
    %v767 = vrot.slane %v766, 2
    %v768 = vadd.f32 %v766, %v767
    %v769 = vrot.slane %v768, 1
    %v770 = vadd.f32 %v768, %v769
    %v771 = vsel %vm277, %v763, 0.0
    %v772 = vrot.slane %v771, 4
    %v773 = vadd.f32 %v771, %v772
    %v774 = vrot.slane %v773, 2
    %v775 = vadd.f32 %v773, %v774
    %v776 = vrot.slane %v775, 1
    %v777 = vadd.f32 %v775, %v776
    %v778 = vlog2.pop %v770
    %v779 = vmul.f32 %v778, 0.6931472
    %v780 = vlog2.pop %v777
    %v781 = vmul.f32 %v780, 0.6931472
    %v782 = vadd.f32 %v750, %v779
    %v783 = vadd.f32 %v757, %v781
    %vm784 = vcmp.gt.s32.totalorder %v246, 7
    %v785 = vsel %vm784, 1, 0
    %786 = vset.pattern.permute.xlu0 0
    %787 = vperm.xlu0 %786, %v785
    %v788 = vpop.permute.xlu0 %787
    %vm789 = vcmp.eq.s32.totalorder %v788, 1
    %v792 = vsel %vm326, %v783, %v782
    %v794 = vsel %vm789, %v792, %v716
    %v796 = vperm.slane %v245, 0
    %v798 = vadd.f32 %v794, %v796
    %vm799 = vcmask 58368
    %v800 = vsel %vm799, %v798, -inf
    %801 = vmax.xlane.f32.xlu0 %v800
    %v802 = vpop.xlane.xlu0 %801
    %v803 = vsub.f32 %v798, %v802
    %v804 = vmul.f32 %v803, 1.442695
    %v805 = vpow.pop %v804
    %v806 = vsel %vm799, %v805, 0.0
    %807 = vadd.xlane.f32.xlu0 %v806
    %v808 = vpop.xlane.xlu0 %807
    %v809 = vlog2.pop %v808
    %v810 = vmul.f32 %v809, 0.6931472
    %v811 = vadd.f32 %v802, %v810
    %vm812 = vcmask 1024
    %v813 = vsel %vm812, %v811, 0.0
    %814 = vadd.xlane.f32.xlu0 %v813
    %v815 = vpop.xlane.xlu0 %814
    %v816 = vrot.slane %v815, 4
    %v817 = vadd.f32 %v815, %v816
    %v818 = vrot.slane %v817, 2
    %v819 = vadd.f32 %v817, %v818
    %v820 = vrot.slane %v819, 1
    %v821 = vadd.f32 %v819, %v820
    %s822 = vtos %v821
    %v823 = vld [vmem:[%s2] sm:$0xff]
    %v824 = vld [vmem:[%s2 + $0x8] sm:$0xff]
    %825 = vset.pattern.permute.xlu0 0
    %826 = vperm.xlu0 %825, %v823
    %v827 = vpop.permute.xlu0 %826
    %828 = vset.pattern.permute.xlu0 0
    %829 = vperm.xlu0 %828, %v824
    %v830 = vpop.permute.xlu0 %829
    %vm831 = vcmp.eq.s32.totalorder %v827, %v46
    %vm832 = vcmp.eq.s32.totalorder %v830, %v46
    %v833 = vsel %vm831, 1, 0
    %v834 = vsel %vm832, 1, 0
    %v835 = vcvt.s32.f32 %v833
    %v836 = vcvt.s32.f32 %v834
    %v837 = vld [vmem:[%s4] sm:$0xff]
    %v838 = vld [vmem:[%s4 + $0x8] sm:$0xff]
    %v839 = vld [vmem:[%s3] sm:$0xff]
    %v840 = vld [vmem:[%s3 + $0x8] sm:$0xff]
    %vm841 = vcmp.lt.s32.totalorder %v837, %v839
    %vm842 = vcmp.lt.s32.totalorder %v838, %v840
    %v843 = vsel %vm841, 1, 0
    %v844 = vsel %vm842, 1, 0
    %v845 = vcvt.s32.f32 %v843
    %v846 = vcvt.s32.f32 %v844
    %v847 = vsub.s32 %v839, 1
    %v848 = vsub.s32 %v840, 1
    %vm849 = vcmp.eq.s32.totalorder %v837, %v847
    %vm850 = vcmp.eq.s32.totalorder %v838, %v848
    %v851 = vsel %vm849, 1, 0
    %v852 = vsel %vm850, 1, 0
    %v853 = vcvt.s32.f32 %v851
    %v854 = vcvt.s32.f32 %v852
    %v855 = vmul.f32 %v239, %v835
    %v856 = vmul.f32 %v242, %v836
    %858 = vset.pattern.permute.xlu0 0
    %859 = vperm.xlu0 %858, %v845
    %v860 = vpop.permute.xlu0 %859
    %863 = vset.pattern.permute.xlu0 0
    %864 = vperm.xlu0 %863, %v846
    %v865 = vpop.permute.xlu0 %864
    %v867 = vmul.f32 %v855, %v860
    %v868 = vmul.f32 %v856, %v865
    %v869 = vsel %vm277, %v867, 0.0
    %v870 = vsel %vm277, %v868, 0.0
    %v871 = vadd.f32 %v869, %v870
    %872 = vadd.xlane.f32.xlu0 %v871
    %v873 = vpop.xlane.xlu0 %872
    %v874 = vrot.slane %v873, 4
    %v875 = vadd.f32 %v873, %v874
    %v876 = vrot.slane %v875, 2
    %v877 = vadd.f32 %v875, %v876
    %v878 = vrot.slane %v877, 1
    %v879 = vadd.f32 %v877, %v878
    %s880 = vtos %v879
    %v881 = vmul.f32 %v835, %v247
    %v882 = vsel %vm799, %v881, 0.0
    %883 = vadd.xlane.f32.xlu0 %v882
    %v884 = vpop.xlane.xlu0 %883
    %v885 = vrot.slane %v884, 4
    %v886 = vadd.f32 %v884, %v885
    %v887 = vrot.slane %v886, 2
    %v888 = vadd.f32 %v886, %v887
    %v889 = vrot.slane %v888, 1
    %v890 = vadd.f32 %v888, %v889
    %s891 = vtos %v890
    %v893 = vsel %vm277, %v835, 0
    %v896 = vsel %vm277, %v836, 0
    %898 = vmatpush.msra.mxu0 0.0
    %899 = vmatpush.msra.mxu0 0.0
    %900 = vmatpush.msra.mxu0 0.0
    %901 = vmatpush.msra.mxu0 0.0
    %902 = vmatpush.msra.mxu0 0.0
    %903 = vmatpush.msra.mxu0 0.0
    %904 = vmatpush.msra.mxu0 0.0
    %905 = vmatpush.msra.mxu0 0.0
    %906 = vmatpush.msra.mxu0 0.0
    %907 = vmatpush.msra.mxu0 0.0
    %908 = vmatpush.msra.mxu0 0.0
    %909 = vmatpush.msra.mxu0 0.0
    %910 = vmatpush.msra.mxu0 0.0
    %911 = vmatpush.msra.mxu0 0.0
    %912 = vmatpush.msra.mxu0 0.0
    %913 = vmatpush.msra.mxu0 %v244
    %914 = vmatmul.f32.gmra.mxu0 %v893
    %v915 = vpop.f32.mrf.mxu0
    %v916 = vadd.f32 0.0, %v915
    %917 = vmatmul.f32.gmra.mxu0 %v896
    %v918 = vpop.f32.mrf.mxu0
    %v919 = vadd.f32 0.0, %v918
    %920 = vdwg.mxu0
    %vm921 = vcmask 1045504
    %v922 = vrot.slane %v835, 2
    %v923 = vrot.slane %v836, 2
    %v924 = vsel %vm921, %v922, %v923
    %v927 = vmul.f32 %v916, %v924
    %v928 = vmul.f32 %v919, %v923
    %v929 = vrot.slane %v860, 2
    %v930 = vrot.slane %v865, 2
    %v931 = vsel %vm921, %v929, %v930
    %v934 = vmul.f32 %v927, %v931
    %v935 = vmul.f32 %v928, %v930
    %v936 = vsel %vm277, %v934, 0.0
    %vm937 = vcmask 62464
    %v938 = vsel %vm937, %v935, 0.0
    %v939 = vadd.f32 %v936, %v938
    %940 = vadd.xlane.f32.xlu0 %v939
    %v941 = vpop.xlane.xlu0 %940
    %v942 = vrot.slane %v941, 4
    %v943 = vadd.f32 %v941, %v942
    %v944 = vrot.slane %v943, 2
    %v945 = vadd.f32 %v943, %v944
    %v946 = vrot.slane %v945, 1
    %v947 = vadd.f32 %v945, %v946
    %s948 = vtos %v947
    %950 = vset.pattern.permute.xlu0 0
    %951 = vperm.xlu0 %950, %v853
    %v952 = vpop.permute.xlu0 %951
    %955 = vset.pattern.permute.xlu0 0
    %956 = vperm.xlu0 %955, %v854
    %v957 = vpop.permute.xlu0 %956
    %v959 = vmul.f32 %v835, %v952
    %v960 = vmul.f32 %v836, %v957
    %v961 = vmul.f32 %v959, %v796
    %v962 = vmul.f32 %v960, %v796
    %v963 = vsel %vm277, %v961, 0.0
    %v964 = vsel %vm277, %v962, 0.0
    %v965 = vadd.f32 %v963, %v964
    %966 = vadd.xlane.f32.xlu0 %v965
    %v967 = vpop.xlane.xlu0 %966
    %v968 = vrot.slane %v967, 4
    %v969 = vadd.f32 %v967, %v968
    %v970 = vrot.slane %v969, 2
    %v971 = vadd.f32 %v969, %v970
    %v972 = vrot.slane %v971, 1
    %v973 = vadd.f32 %v971, %v972
    %s974 = vtos %v973
    %s975 = sadd.f32 %s880, %s891
    %s976 = sadd.f32 %s975, %s948
    %s977 = sadd.f32 %s976, %s974
    %s978 = ssub.f32 %s822, %s977
    %s979 = scalar_lea.smem [#allocation2], 0
    %980 = sst [smem:[%s979]] %s978
    // Predicated region
    $region50: #{transformers_crf_forward.1} parent=1 // pred_check
      _
    $region51: #{transformers_crf_forward.1} parent=1 // pred_check_branch
      %982 = sbr.rel (0) target = $region53
    $region52: #{transformers_crf_forward.1} parent=1 // pred_region
      %984 = vsyncadd [#allocation3], 0
      %s986 = sshll.u32 %s12, 4
      %s987 = int_to_ptr.hbm [resolvable:$true] %s986
      %989 = dma.smem_to_hbm [#allocation2], 16, %s987, [#allocation3]
    $region53: #{transformers_crf_forward.1} parent=1 // pred_fallthru
      _
    // Predicated region
    $region54: #{transformers_crf_forward.1} parent=1 // pred_check
      _
    $region55: #{transformers_crf_forward.1} parent=1 // pred_check_branch
      %991 = sbr.rel (0) target = $region57
    $region56: #{transformers_crf_forward.1} parent=1 // pred_region
      %993 = dma.done [#allocation3], 16
    $region57: #{transformers_crf_forward.1} parent=1 // pred_fallthru
      _
    %994 = sfence
    %995 = vsyncpa [#allocation3], 1

</llo_original>
